<compile_context>
chip_gen: v6e
topology: v6e:2x2x1
jax: 0.10.0
libtpu: 0.0.40
codegen_flags: <defaults>
</compile_context>

<pallas_src>
import functools

import jax
import jax.numpy as jnp
from jax import lax
from jax.experimental import pallas as pl
from jax.experimental.pallas import tpu as pltpu


def _round_up(a: int, b: int) -> int:
    return ((a + b - 1) // b) * b


def _cdiv(a: int, b: int) -> int:
    return (a + b - 1) // b


def centrality_kernel(in_first_ref, in_last_ref, out_first_ref, out_last_ref,
                      x_ref, dst_ref, src_ref, z_ref, o_ref,
                      acc_in_ref, acc_out_ref,
                      *, max_in_degree: int, max_out_degree: int,
                      edge_sublanes: int):
    tm = x_ref.shape[0]                      # node tile size
    i = pl.program_id(0)                     # node tile ("parallel")
    k = pl.program_id(1)                     # edge block (reduction, "arbitrary")

    @pl.when(k == 0)
    def _():
        acc_in_ref[...] = jnp.zeros_like(acc_in_ref)
        acc_out_ref[...] = jnp.zeros_like(acc_out_ref)

    # Global node ids of this tile, (tm, 1, 1) so they broadcast against the
    # (8, 128) edge chunks.
    node_ids = i * tm + lax.broadcasted_iota(jnp.int32, (tm, 1, 1), 0)
    n_chunks = edge_sublanes // 8

    # In-degree: dst stream is sorted, so only edge blocks in
    # [in_first[i], in_last[i]] can contain nodes of this tile; skip the rest.
    # Accumulate same-layout (tm, 8, 128) compare masks — no per-step reduce.
    @pl.when((k >= in_first_ref[i]) & (k <= in_last_ref[i]))
    def _():
        dst = dst_ref[...]                                   # (edge_sub, 128)
        acc = acc_in_ref[...]
        for c in range(n_chunks):                            # unrolled, VALU only
            chunk = dst[c * 8:(c + 1) * 8]                   # (8, 128) static slice
            acc = acc + (chunk[None, :, :] == node_ids).astype(jnp.int32)
        acc_in_ref[...] = acc

    # Out-degree: same with the src-sorted stream.
    @pl.when((k >= out_first_ref[i]) & (k <= out_last_ref[i]))
    def _():
        src = src_ref[...]
        acc = acc_out_ref[...]
        for c in range(n_chunks):
            chunk = src[c * 8:(c + 1) * 8]
            acc = acc + (chunk[None, :, :] == node_ids).astype(jnp.int32)
        acc_out_ref[...] = acc

    @pl.when(k == pl.num_programs(1) - 1)
    def _():
        # Deferred sublane + lane reduce (once per node tile).
        in_deg = jnp.sum(jnp.sum(acc_in_ref[...], axis=1), axis=1, keepdims=True)
        out_deg = jnp.sum(jnp.sum(acc_out_ref[...], axis=1), axis=1, keepdims=True)
        # decrease_to_max_value(deg, max_degree - 1)
        in_deg = jnp.minimum(in_deg, max_in_degree - 1)
        out_deg = jnp.minimum(out_deg, max_out_degree - 1)

        # One combined one-hot against the concatenated [z_in; z_out] table:
        # a single MXU matmul yields z_in[in_deg] + z_out[out_deg].
        kk = max_in_degree + max_out_degree
        cols = lax.broadcasted_iota(jnp.int32, (tm, kk), 1)
        onehot = ((cols == in_deg) |
                  (cols == (out_deg + max_in_degree))).astype(jnp.float32)
        gathered = jnp.dot(onehot, z_ref[...].astype(jnp.float32),
                           preferred_element_type=jnp.float32)       # (tm, D)

        o_ref[...] = (x_ref[...].astype(jnp.float32)
                      + gathered).astype(o_ref.dtype)


def centrality_encoding(x, edge_index, z_in, z_out, *,
                        node_tile=512, edge_sublanes=32):
    """x: (N, D), edge_index: (2, E) int (row0=src, row1=dst),
    z_in: (max_in, D), z_out: (max_out, D)."""
    n, d = x.shape
    max_in = z_in.shape[0]
    max_out = z_out.shape[0]
    num_edges = edge_index.shape[1]

    # --- node tiling: dtype-aware min sublane tile; cap so we get >= 2 node
    #     tiles when possible (v7x has 2 TensorCores on the "parallel" axis).
    itemsize = jnp.dtype(x.dtype).itemsize
    sub_min = max(8, 32 // max(int(itemsize), 1))        # f32:8, bf16:16, int8:32
    tm = min(node_tile, _round_up(max(_cdiv(n, 2), 1), sub_min))
    tm = max(sub_min, _round_up(tm, sub_min))
    n_pad = _round_up(n, tm)
    x_p = x if n_pad == n else jnp.pad(x, ((0, n_pad - n), (0, 0)))
    n_tiles = n_pad // tm

    # --- edge tiling: two independently SORTED streams, lane-dense
    #     (E_pad/128, 128) int32, padded with a big sentinel (keeps order,
    #     never matches a node id).
    edge_sublanes = max(8, _round_up(edge_sublanes, 8))
    te = edge_sublanes * 128
    e_pad = _round_up(max(num_edges, 1), te)
    n_eblocks = e_pad // te
    sentinel = 2 ** 30

    src_sorted = jnp.sort(edge_index[0].astype(jnp.int32))
    dst_sorted = jnp.sort(edge_index[1].astype(jnp.int32))
    if e_pad != num_edges:
        pad = ((0, e_pad - num_edges),)
        src_sorted = jnp.pad(src_sorted, pad, constant_values=sentinel)
        dst_sorted = jnp.pad(dst_sorted, pad, constant_values=sentinel)
    src2d = src_sorted.reshape(e_pad // 128, 128)
    dst2d = dst_sorted.reshape(e_pad // 128, 128)

    # --- per node-tile edge-block ranges (scalar prefetch).  Empty ranges are
    #     encoded as first = n_eblocks, last = n_eblocks - 1, so the kernel
    #     guard (first <= k <= last) is never true and the clamped index map
    #     still yields a valid block index.
    def block_range(sorted_vals):
        tile_lo = jnp.arange(n_tiles, dtype=jnp.int32) * tm
        lo = jnp.searchsorted(sorted_vals, tile_lo, side='left').astype(jnp.int32)
        hi = jnp.searchsorted(sorted_vals, tile_lo + tm, side='left').astype(jnp.int32)
        empty = hi <= lo
        first = jnp.where(empty, n_eblocks, lo // te).astype(jnp.int32)
        last = jnp.where(empty, n_eblocks - 1, (hi - 1) // te).astype(jnp.int32)
        return first, last

    in_first, in_last = block_range(dst_sorted)      # in-degree uses dst
    out_first, out_last = block_range(src_sorted)    # out-degree uses src

    # --- single concatenated degree-embedding table.
    z_cat = jnp.concatenate([z_in, z_out], axis=0)   # (max_in+max_out, D)

    kernel = functools.partial(centrality_kernel,
                               max_in_degree=max_in,
                               max_out_degree=max_out,
                               edge_sublanes=edge_sublanes)

    # Edge index_maps clamp the block index into the tile's own range: blocks
    # outside the range map to a constant block index, so Pallas skips the
    # redundant DMA (consecutive equal block indices are not re-fetched).
    def dst_map(i, k, in_f, in_l, out_f, out_l):
        return (jnp.minimum(jnp.maximum(k, in_f[i]), in_l[i]), 0)

    def src_map(i, k, in_f, in_l, out_f, out_l):
        return (jnp.minimum(jnp.maximum(k, out_f[i]), out_l[i]), 0)

    grid = (n_tiles, n_eblocks)                      # reduction (edge) axis last

    out = pl.pallas_call(
        kernel,
        out_shape=jax.ShapeDtypeStruct((n_pad, d), x.dtype),
        grid_spec=pltpu.PrefetchScalarGridSpec(
            num_scalar_prefetch=4,
            grid=grid,
            in_specs=[
                pl.BlockSpec((tm, d), lambda i, k, a, b, c, e: (i, 0)),       # x tile
                pl.BlockSpec((edge_sublanes, 128), dst_map),                  # dst stream
                pl.BlockSpec((edge_sublanes, 128), src_map),                  # src stream
                pl.BlockSpec(z_cat.shape, lambda i, k, a, b, c, e: (0, 0)),   # z table
            ],
            out_specs=pl.BlockSpec((tm, d), lambda i, k, a, b, c, e: (i, 0)),
            scratch_shapes=[
                pltpu.VMEM((tm, 8, 128), jnp.int32),   # chunk-folded in-degree masks
                pltpu.VMEM((tm, 8, 128), jnp.int32),   # chunk-folded out-degree masks
            ],
        ),
        compiler_params=pltpu.CompilerParams(
            dimension_semantics=("parallel", "arbitrary"),
            vmem_limit_bytes=32 * 1024 * 1024),
    )(in_first, in_last, out_first, out_last, x_p, dst2d, src2d, z_cat)

    return out[:n] if n_pad != n else out


def centrality_encoding_ref(x, edge_index, z_in, z_out):
    """Pure-JAX reference mirroring the PyTorch forward."""
    n = x.shape[0]
    max_in = z_in.shape[0]
    max_out = z_out.shape[0]
    in_deg = jnp.zeros((n,), jnp.int32).at[edge_index[1]].add(1)
    out_deg = jnp.zeros((n,), jnp.int32).at[edge_index[0]].add(1)
    in_deg = jnp.minimum(in_deg, max_in - 1)
    out_deg = jnp.minimum(out_deg, max_out - 1)
    return x + z_in[in_deg] + z_out[out_deg]


if __name__ == "__main__":
    # Module hyper-parameters (small, consistent with the PyTorch __init__).
    max_in_degree = 8
    max_out_degree = 8
    node_dim = 32

    key = jax.random.PRNGKey(0)
    kz_in, kz_out, kx, ke, kx2, ke2, kx3, ke3 = jax.random.split(key, 8)

    # Deterministic "parameters" (torch.randn equivalents).
    z_in = jax.random.normal(kz_in, (max_in_degree, node_dim), jnp.float32)
    z_out = jax.random.normal(kz_out, (max_out_degree, node_dim), jnp.float32)

    # --- Test 1: tiny graph, default tiling (2 node tiles, 1 edge block). ---
    num_nodes, num_edges = 16, 24
    x = jax.random.normal(kx, (num_nodes, node_dim), jnp.float32)
    edge_index = jax.random.randint(ke, (2, num_edges), 0, num_nodes, jnp.int32)

    out = jax.block_until_ready(centrality_encoding(x, edge_index, z_in, z_out))
    ref = centrality_encoding_ref(x, edge_index, z_in, z_out)
    assert jnp.allclose(out, ref, atol=1e-5, rtol=1e-5), "mismatch (test 1)"

    # --- Test 2: multi node-tile + multi edge-block grid (exercises the
    #     accumulator init/finalize, node padding, sorted-stream clamped
    #     index maps and degree clamping). ---
    num_nodes2, num_edges2 = 40, 2500
    x2 = jax.random.normal(kx2, (num_nodes2, node_dim), jnp.float32)
    edge_index2 = jax.random.randint(ke2, (2, num_edges2), 0, num_nodes2,
                                     jnp.int32)
    out2 = jax.block_until_ready(
        centrality_encoding(x2, edge_index2, z_in, z_out,
                            node_tile=16, edge_sublanes=8))
    ref2 = centrality_encoding_ref(x2, edge_index2, z_in, z_out)
    assert jnp.allclose(out2, ref2, atol=1e-5, rtol=1e-5), "mismatch (test 2)"

    # --- Test 3: isolated node tiles (empty per-tile edge ranges: exercises
    #     the empty-range encoding and the pl.when skip path). ---
    num_nodes3, num_edges3 = 64, 300
    x3 = jax.random.normal(kx3, (num_nodes3, node_dim), jnp.float32)
    edge_index3 = jax.random.randint(ke3, (2, num_edges3), 0, 16, jnp.int32)
    out3 = jax.block_until_ready(
        centrality_encoding(x3, edge_index3, z_in, z_out,
                            node_tile=16, edge_sublanes=8))
    ref3 = centrality_encoding_ref(x3, edge_index3, z_in, z_out)
    assert jnp.allclose(out3, ref3, atol=1e-5, rtol=1e-5), "mismatch (test 3)"

    print("KERNEL_OK")
</pallas_src>

<mosaic_0001>
module attributes {stable_mosaic.version = 11 : i64} {
  func.func @centrality_kernel(%arg0: i32, %arg1: i32, %arg2: memref<2xi32, #tpu.memory_space<smem>>, %arg3: memref<2xi32, #tpu.memory_space<smem>>, %arg4: memref<2xi32, #tpu.memory_space<smem>>, %arg5: memref<2xi32, #tpu.memory_space<smem>>, %arg6: memref<8x32xf32, #tpu.memory_space<vmem>>, %arg7: memref<32x128xi32, #tpu.memory_space<vmem>>, %arg8: memref<32x128xi32, #tpu.memory_space<vmem>>, %arg9: memref<16x32xf32, #tpu.memory_space<vmem>>, %arg10: memref<8x32xf32, #tpu.memory_space<vmem>>, %arg11: memref<8x8x128xi32, #tpu.memory_space<vmem>>, %arg12: memref<8x8x128xi32, #tpu.memory_space<vmem>>) attributes {dimension_semantics = [#tpu.dimension_semantics<parallel>, #tpu.dimension_semantics<arbitrary>], iteration_bounds = array<i64: 2, 1>, scalar_prefetch = 4 : i64, scratch_operands = 2 : i64, tpu.core_type = #tpu.core_type<tc>, window_params = [{transform_indices = @transform_0, window_bounds = array<i64: 8, 32>}, {transform_indices = @transform_1, window_bounds = array<i64: 32, 128>}, {transform_indices = @transform_2, window_bounds = array<i64: 32, 128>}, {pipeline_mode = #tpu.pipeline_mode<synchronous>, transform_indices = @transform_3, window_bounds = array<i64: 16, 32>}, {transform_indices = @transform_4, window_bounds = array<i64: 8, 32>}]} {
    %c0_i32 = arith.constant 0 : i32
    %0 = arith.cmpi eq, %arg1, %c0_i32 : i32
    %1 = arith.extui %0 : i1 to i32
    %c0_i32_0 = arith.constant 0 : i32
    %2 = arith.cmpi ne, %1, %c0_i32_0 : i32
    scf.if %2 {
      %c0_i32_5 = arith.constant 0 : i32
      %28 = vector.broadcast %c0_i32_5 : i32 to vector<8x8x128xi32>
      %c0 = arith.constant 0 : index
      %c0_6 = arith.constant 0 : index
      %c0_7 = arith.constant 0 : index
      %29 = vector.load %arg11[%c0, %c0_6, %c0_7] : memref<8x8x128xi32, #tpu.memory_space<vmem>>, vector<8x8x128xi32>
      tpu.vector_store %arg11[%c0, %c0_6, %c0_7], %28 {strides = array<i32>} : memref<8x8x128xi32, #tpu.memory_space<vmem>>, vector<8x8x128xi32>,
      %c0_i32_8 = arith.constant 0 : i32
      %30 = vector.broadcast %c0_i32_8 : i32 to vector<8x8x128xi32>
      %c0_9 = arith.constant 0 : index
      %c0_10 = arith.constant 0 : index
      %c0_11 = arith.constant 0 : index
      %31 = vector.load %arg12[%c0_9, %c0_10, %c0_11] : memref<8x8x128xi32, #tpu.memory_space<vmem>>, vector<8x8x128xi32>
      tpu.vector_store %arg12[%c0_9, %c0_10, %c0_11], %30 {strides = array<i32>} : memref<8x8x128xi32, #tpu.memory_space<vmem>>, vector<8x8x128xi32>,
    } else {
    }
    %c8_i32 = arith.constant 8 : i32
    %3 = arith.muli %arg0, %c8_i32 : i32
    %4 = tpu.iota {dimensions = array<i32: 0>} : vector<8x1x1xi32>
    %5 = vector.broadcast %3 : i32 to vector<8x1x1xi32>
    %6 = arith.addi %5, %4 : vector<8x1x1xi32>
    %7 = arith.index_cast %arg0 : i32 to index
    %8 = memref.load %arg2[%7] : memref<2xi32, #tpu.memory_space<smem>>
    %9 = arith.cmpi sge, %arg1, %8 : i32
    %10 = arith.index_cast %arg0 : i32 to index
    %11 = memref.load %arg3[%10] : memref<2xi32, #tpu.memory_space<smem>>
    %12 = arith.cmpi sle, %arg1, %11 : i32
    %13 = arith.andi %9, %12 : i1
    %14 = arith.extui %13 : i1 to i32
    %c0_i32_1 = arith.constant 0 : i32
    %15 = arith.cmpi ne, %14, %c0_i32_1 : i32
    scf.if %15 {
      %c0 = arith.constant 0 : index
      %c0_5 = arith.constant 0 : index
      %28 = vector.load %arg7[%c0, %c0_5] : memref<32x128xi32, #tpu.memory_space<vmem>>, vector<32x128xi32>
      %c0_6 = arith.constant 0 : index
      %c0_7 = arith.constant 0 : index
      %c0_8 = arith.constant 0 : index
      %29 = vector.load %arg11[%c0_6, %c0_7, %c0_8] : memref<8x8x128xi32, #tpu.memory_space<vmem>>, vector<8x8x128xi32>
      %30 = vector.extract_strided_slice %28 {offsets = [0, 0], sizes = [8, 128], strides = [1, 1]} : vector<32x128xi32> to vector<8x128xi32>
      %31 = vector.shape_cast %30 : vector<8x128xi32> to vector<1x8x128xi32>
      %32 = vector.broadcast %31 : vector<1x8x128xi32> to vector<8x8x128xi32>
      %33 = vector.broadcast %6 : vector<8x1x1xi32> to vector<8x8x128xi32>
      %34 = arith.cmpi eq, %32, %33 : vector<8x8x128xi32>
      %35 = arith.extui %34 : vector<8x8x128xi1> to vector<8x8x128xi32>
      %36 = arith.addi %29, %35 : vector<8x8x128xi32>
      %37 = vector.extract_strided_slice %28 {offsets = [8, 0], sizes = [8, 128], strides = [1, 1]} : vector<32x128xi32> to vector<8x128xi32>
      %38 = vector.shape_cast %37 : vector<8x128xi32> to vector<1x8x128xi32>
      %39 = vector.broadcast %38 : vector<1x8x128xi32> to vector<8x8x128xi32>
      %40 = vector.broadcast %6 : vector<8x1x1xi32> to vector<8x8x128xi32>
      %41 = arith.cmpi eq, %39, %40 : vector<8x8x128xi32>
      %42 = arith.extui %41 : vector<8x8x128xi1> to vector<8x8x128xi32>
      %43 = arith.addi %36, %42 : vector<8x8x128xi32>
      %44 = vector.extract_strided_slice %28 {offsets = [16, 0], sizes = [8, 128], strides = [1, 1]} : vector<32x128xi32> to vector<8x128xi32>
      %45 = vector.shape_cast %44 : vector<8x128xi32> to vector<1x8x128xi32>
      %46 = vector.broadcast %45 : vector<1x8x128xi32> to vector<8x8x128xi32>
      %47 = vector.broadcast %6 : vector<8x1x1xi32> to vector<8x8x128xi32>
      %48 = arith.cmpi eq, %46, %47 : vector<8x8x128xi32>
      %49 = arith.extui %48 : vector<8x8x128xi1> to vector<8x8x128xi32>
      %50 = arith.addi %43, %49 : vector<8x8x128xi32>
      %51 = vector.extract_strided_slice %28 {offsets = [24, 0], sizes = [8, 128], strides = [1, 1]} : vector<32x128xi32> to vector<8x128xi32>
      %52 = vector.shape_cast %51 : vector<8x128xi32> to vector<1x8x128xi32>
      %53 = vector.broadcast %52 : vector<1x8x128xi32> to vector<8x8x128xi32>
      %54 = vector.broadcast %6 : vector<8x1x1xi32> to vector<8x8x128xi32>
      %55 = arith.cmpi eq, %53, %54 : vector<8x8x128xi32>
      %56 = arith.extui %55 : vector<8x8x128xi1> to vector<8x8x128xi32>
      %57 = arith.addi %50, %56 : vector<8x8x128xi32>
      %c0_9 = arith.constant 0 : index
      %c0_10 = arith.constant 0 : index
      %c0_11 = arith.constant 0 : index
      %58 = vector.load %arg11[%c0_9, %c0_10, %c0_11] : memref<8x8x128xi32, #tpu.memory_space<vmem>>, vector<8x8x128xi32>
      tpu.vector_store %arg11[%c0_9, %c0_10, %c0_11], %57 {strides = array<i32>} : memref<8x8x128xi32, #tpu.memory_space<vmem>>, vector<8x8x128xi32>,
    } else {
    }
    %16 = arith.index_cast %arg0 : i32 to index
    %17 = memref.load %arg4[%16] : memref<2xi32, #tpu.memory_space<smem>>
    %18 = arith.cmpi sge, %arg1, %17 : i32
    %19 = arith.index_cast %arg0 : i32 to index
    %20 = memref.load %arg5[%19] : memref<2xi32, #tpu.memory_space<smem>>
    %21 = arith.cmpi sle, %arg1, %20 : i32
    %22 = arith.andi %18, %21 : i1
    %23 = arith.extui %22 : i1 to i32
    %c0_i32_2 = arith.constant 0 : i32
    %24 = arith.cmpi ne, %23, %c0_i32_2 : i32
    scf.if %24 {
      %c0 = arith.constant 0 : index
      %c0_5 = arith.constant 0 : index
      %28 = vector.load %arg8[%c0, %c0_5] : memref<32x128xi32, #tpu.memory_space<vmem>>, vector<32x128xi32>
      %c0_6 = arith.constant 0 : index
      %c0_7 = arith.constant 0 : index
      %c0_8 = arith.constant 0 : index
      %29 = vector.load %arg12[%c0_6, %c0_7, %c0_8] : memref<8x8x128xi32, #tpu.memory_space<vmem>>, vector<8x8x128xi32>
      %30 = vector.extract_strided_slice %28 {offsets = [0, 0], sizes = [8, 128], strides = [1, 1]} : vector<32x128xi32> to vector<8x128xi32>
      %31 = vector.shape_cast %30 : vector<8x128xi32> to vector<1x8x128xi32>
      %32 = vector.broadcast %31 : vector<1x8x128xi32> to vector<8x8x128xi32>
      %33 = vector.broadcast %6 : vector<8x1x1xi32> to vector<8x8x128xi32>
      %34 = arith.cmpi eq, %32, %33 : vector<8x8x128xi32>
      %35 = arith.extui %34 : vector<8x8x128xi1> to vector<8x8x128xi32>
      %36 = arith.addi %29, %35 : vector<8x8x128xi32>
      %37 = vector.extract_strided_slice %28 {offsets = [8, 0], sizes = [8, 128], strides = [1, 1]} : vector<32x128xi32> to vector<8x128xi32>
      %38 = vector.shape_cast %37 : vector<8x128xi32> to vector<1x8x128xi32>
      %39 = vector.broadcast %38 : vector<1x8x128xi32> to vector<8x8x128xi32>
      %40 = vector.broadcast %6 : vector<8x1x1xi32> to vector<8x8x128xi32>
      %41 = arith.cmpi eq, %39, %40 : vector<8x8x128xi32>
      %42 = arith.extui %41 : vector<8x8x128xi1> to vector<8x8x128xi32>
      %43 = arith.addi %36, %42 : vector<8x8x128xi32>
      %44 = vector.extract_strided_slice %28 {offsets = [16, 0], sizes = [8, 128], strides = [1, 1]} : vector<32x128xi32> to vector<8x128xi32>
      %45 = vector.shape_cast %44 : vector<8x128xi32> to vector<1x8x128xi32>
      %46 = vector.broadcast %45 : vector<1x8x128xi32> to vector<8x8x128xi32>
      %47 = vector.broadcast %6 : vector<8x1x1xi32> to vector<8x8x128xi32>
      %48 = arith.cmpi eq, %46, %47 : vector<8x8x128xi32>
      %49 = arith.extui %48 : vector<8x8x128xi1> to vector<8x8x128xi32>
      %50 = arith.addi %43, %49 : vector<8x8x128xi32>
      %51 = vector.extract_strided_slice %28 {offsets = [24, 0], sizes = [8, 128], strides = [1, 1]} : vector<32x128xi32> to vector<8x128xi32>
      %52 = vector.shape_cast %51 : vector<8x128xi32> to vector<1x8x128xi32>
      %53 = vector.broadcast %52 : vector<1x8x128xi32> to vector<8x8x128xi32>
      %54 = vector.broadcast %6 : vector<8x1x1xi32> to vector<8x8x128xi32>
      %55 = arith.cmpi eq, %53, %54 : vector<8x8x128xi32>
      %56 = arith.extui %55 : vector<8x8x128xi1> to vector<8x8x128xi32>
      %57 = arith.addi %50, %56 : vector<8x8x128xi32>
      %c0_9 = arith.constant 0 : index
      %c0_10 = arith.constant 0 : index
      %c0_11 = arith.constant 0 : index
      %58 = vector.load %arg12[%c0_9, %c0_10, %c0_11] : memref<8x8x128xi32, #tpu.memory_space<vmem>>, vector<8x8x128xi32>
      tpu.vector_store %arg12[%c0_9, %c0_10, %c0_11], %57 {strides = array<i32>} : memref<8x8x128xi32, #tpu.memory_space<vmem>>, vector<8x8x128xi32>,
    } else {
    }
    %c0_i32_3 = arith.constant 0 : i32
    %25 = arith.cmpi eq, %arg1, %c0_i32_3 : i32
    %26 = arith.extui %25 : i1 to i32
    %c0_i32_4 = arith.constant 0 : i32
    %27 = arith.cmpi ne, %26, %c0_i32_4 : i32
    scf.if %27 {
      %c0 = arith.constant 0 : index
      %c0_5 = arith.constant 0 : index
      %c0_6 = arith.constant 0 : index
      %28 = vector.load %arg11[%c0, %c0_5, %c0_6] : memref<8x8x128xi32, #tpu.memory_space<vmem>>, vector<8x8x128xi32>
      %cst = arith.constant dense<0> : vector<8x128xi32>
      %29 = vector.multi_reduction <add>, %28, %cst [1] : vector<8x8x128xi32> to vector<8x128xi32>
      %cst_7 = arith.constant dense<0> : vector<8xi32>
      %30 = vector.multi_reduction <add>, %29, %cst_7 [1] : vector<8x128xi32> to vector<8xi32>
      %31 = vector.shape_cast %30 : vector<8xi32> to vector<8x1xi32>
      %c0_8 = arith.constant 0 : index
      %c0_9 = arith.constant 0 : index
      %c0_10 = arith.constant 0 : index
      %32 = vector.load %arg12[%c0_8, %c0_9, %c0_10] : memref<8x8x128xi32, #tpu.memory_space<vmem>>, vector<8x8x128xi32>
      %cst_11 = arith.constant dense<0> : vector<8x128xi32>
      %33 = vector.multi_reduction <add>, %32, %cst_11 [1] : vector<8x8x128xi32> to vector<8x128xi32>
      %cst_12 = arith.constant dense<0> : vector<8xi32>
      %34 = vector.multi_reduction <add>, %33, %cst_12 [1] : vector<8x128xi32> to vector<8xi32>
      %35 = vector.shape_cast %34 : vector<8xi32> to vector<8x1xi32>
      %c7_i32 = arith.constant 7 : i32
      %36 = vector.broadcast %c7_i32 : i32 to vector<8x1xi32>
      %37 = arith.minsi %31, %36 : vector<8x1xi32>
      %c7_i32_13 = arith.constant 7 : i32
      %38 = vector.broadcast %c7_i32_13 : i32 to vector<8x1xi32>
      %39 = arith.minsi %35, %38 : vector<8x1xi32>
      %40 = tpu.iota {dimensions = array<i32: 1>} : vector<8x16xi32>
      %41 = vector.broadcast %37 : vector<8x1xi32> to vector<8x16xi32>
      %42 = arith.cmpi eq, %40, %41 : vector<8x16xi32>
      %c8_i32_14 = arith.constant 8 : i32
      %43 = vector.broadcast %c8_i32_14 : i32 to vector<8x1xi32>
      %44 = arith.addi %39, %43 : vector<8x1xi32>
      %45 = vector.broadcast %44 : vector<8x1xi32> to vector<8x16xi32>
      %46 = arith.cmpi eq, %40, %45 : vector<8x16xi32>
      %47 = arith.ori %42, %46 : vector<8x16xi1>
      %48 = arith.extui %47 : vector<8x16xi1> to vector<8x16xi32>
      %49 = arith.sitofp %48 : vector<8x16xi32> to vector<8x16xf32>
      %c0_15 = arith.constant 0 : index
      %c0_16 = arith.constant 0 : index
      %50 = vector.load %arg9[%c0_15, %c0_16] : memref<16x32xf32, #tpu.memory_space<vmem>>, vector<16x32xf32>
      %cst_17 = arith.constant dense<0.000000e+00> : vector<8x32xf32>
      %51 = tpu.matmul %49, %50, %cst_17 {dimension_numbers = #tpu.dot_dimension_numbers<[1], [0], [0], [1], [0, 0, 1, 1], [], []>} : vector<8x16xf32>, vector<16x32xf32>, vector<8x32xf32> -> vector<8x32xf32>
      %c0_18 = arith.constant 0 : index
      %c0_19 = arith.constant 0 : index
      %52 = vector.load %arg6[%c0_18, %c0_19] : memref<8x32xf32, #tpu.memory_space<vmem>>, vector<8x32xf32>
      %53 = arith.addf %52, %51 : vector<8x32xf32>
      %c0_20 = arith.constant 0 : index
      %c0_21 = arith.constant 0 : index
      %54 = vector.load %arg10[%c0_20, %c0_21] : memref<8x32xf32, #tpu.memory_space<vmem>>, vector<8x32xf32>
      tpu.vector_store %arg10[%c0_20, %c0_21], %53 {strides = array<i32>} : memref<8x32xf32, #tpu.memory_space<vmem>>, vector<8x32xf32>,
    } else {
    }
    return
  }
  func.func @transform_0(%arg0: i32, %arg1: i32, %arg2: memref<2xi32, #tpu.memory_space<smem>>, %arg3: memref<2xi32, #tpu.memory_space<smem>>, %arg4: memref<2xi32, #tpu.memory_space<smem>>, %arg5: memref<2xi32, #tpu.memory_space<smem>>) -> (i32, i32) {
    %c0_i32 = arith.constant 0 : i32
    %c0_i32_0 = arith.constant 0 : i32
    return %arg0, %c0_i32 : i32, i32
  }
  func.func @transform_1(%arg0: i32, %arg1: i32, %arg2: memref<2xi32, #tpu.memory_space<smem>>, %arg3: memref<2xi32, #tpu.memory_space<smem>>, %arg4: memref<2xi32, #tpu.memory_space<smem>>, %arg5: memref<2xi32, #tpu.memory_space<smem>>) -> (i32, i32) {
    %0 = arith.index_cast %arg0 : i32 to index
    %1 = memref.load %arg2[%0] : memref<2xi32, #tpu.memory_space<smem>>
    %2 = arith.maxsi %arg1, %1 : i32
    %3 = arith.index_cast %arg0 : i32 to index
    %4 = memref.load %arg3[%3] : memref<2xi32, #tpu.memory_space<smem>>
    %5 = arith.minsi %2, %4 : i32
    %c0_i32 = arith.constant 0 : i32
    %c0_i32_0 = arith.constant 0 : i32
    return %5, %c0_i32 : i32, i32
  }
  func.func @transform_2(%arg0: i32, %arg1: i32, %arg2: memref<2xi32, #tpu.memory_space<smem>>, %arg3: memref<2xi32, #tpu.memory_space<smem>>, %arg4: memref<2xi32, #tpu.memory_space<smem>>, %arg5: memref<2xi32, #tpu.memory_space<smem>>) -> (i32, i32) {
    %0 = arith.index_cast %arg0 : i32 to index
    %1 = memref.load %arg4[%0] : memref<2xi32, #tpu.memory_space<smem>>
    %2 = arith.maxsi %arg1, %1 : i32
    %3 = arith.index_cast %arg0 : i32 to index
    %4 = memref.load %arg5[%3] : memref<2xi32, #tpu.memory_space<smem>>
    %5 = arith.minsi %2, %4 : i32
    %c0_i32 = arith.constant 0 : i32
    %c0_i32_0 = arith.constant 0 : i32
    return %5, %c0_i32 : i32, i32
  }
  func.func @transform_3(%arg0: i32, %arg1: i32, %arg2: memref<2xi32, #tpu.memory_space<smem>>, %arg3: memref<2xi32, #tpu.memory_space<smem>>, %arg4: memref<2xi32, #tpu.memory_space<smem>>, %arg5: memref<2xi32, #tpu.memory_space<smem>>) -> (i32, i32) {
    %c0_i32 = arith.constant 0 : i32
    %c0_i32_0 = arith.constant 0 : i32
    %c0_i32_1 = arith.constant 0 : i32
    return %c0_i32, %c0_i32_0 : i32, i32
  }
  func.func @transform_4(%arg0: i32, %arg1: i32, %arg2: memref<2xi32, #tpu.memory_space<smem>>, %arg3: memref<2xi32, #tpu.memory_space<smem>>, %arg4: memref<2xi32, #tpu.memory_space<smem>>, %arg5: memref<2xi32, #tpu.memory_space<smem>>) -> (i32, i32) {
    %c0_i32 = arith.constant 0 : i32
    %c0_i32_0 = arith.constant 0 : i32
    return %arg0, %c0_i32 : i32, i32
  }
}

</mosaic_0001>

<llo_original>
// kernel: tpu_custom_call.1
$region0: #{tpu_custom_call.1}
  #allocation0 [shape = 'u32[]', space=smem, size = 0x4, offset = 0x4, fixed_abs, tag = 'smem constant byte address 0x4 - core index']
  #allocation1 [shape = 'u32[144,128]{1,0:T(1,128)}', space=vmem, size = 0x12000, scoped, tag = 'internal scratch']
  #allocation2 [shape = 's32[8,8,128]{2,1,0:T(8,128)}', space=vmem, size = 0x8000, scoped, tag = 'scratch operand']
  #allocation3 [shape = 's32[8,8,128]{2,1,0:T(8,128)}', space=vmem, size = 0x8000, scoped, tag = 'scratch operand']
  #allocation4 [shape = 's32[1]{0}', space=sflag, size = 0x4, scoped, tag = 'scoped memory for tpu_custom_call.1']
  #allocation5 [shape = 'u8[512]{0}', space=smem, size = 0x200, scoped, tag = 'prefetched SMEM operand 0']
  #allocation6 [shape = 'u8[512]{0}', space=smem, size = 0x200, scoped, tag = 'prefetched SMEM operand 1']
  #allocation7 [shape = 'u8[512]{0}', space=smem, size = 0x200, scoped, tag = 'prefetched SMEM operand 2']
  #allocation8 [shape = 'u8[512]{0}', space=smem, size = 0x200, scoped, tag = 'prefetched SMEM operand 3']
  %s0 = inlined_call_operand.hbm [shape: s32[2], index: 0, kind: input, shape index: {}]
  %s1 = inlined_call_operand.vmem [shape: s32[2], index: 1, kind: input, shape index: {}]
  %s2 = inlined_call_operand.vmem [shape: s32[2], index: 2, kind: input, shape index: {}]
  %s3 = inlined_call_operand.vmem [shape: s32[2], index: 3, kind: input, shape index: {}]
  %s4 = inlined_call_operand.hbm [shape: f32[16,32], index: 4, kind: input, shape index: {}]
  %s5 = inlined_call_operand.hbm [shape: s32[32,128], index: 5, kind: input, shape index: {}]
  %s6 = inlined_call_operand.hbm [shape: s32[32,128], index: 6, kind: input, shape index: {}]
  %s7 = inlined_call_operand.hbm [shape: f32[16,32], index: 7, kind: input, shape index: {}]
  %s8 = inlined_call_operand.hbm [shape: f32[16,32], index: 8, kind: output, shape index: {}]
  %s9 = sld [smem:[#allocation0]]
  $region81: #{tpu_custom_call.1} parent=0
    _
  %s11 = ssub.s32 1, %s9
  %s12 = scalar_select 0, %s11, %s9
  %14 = dma.hbm_to_smem %s0, 16, [#allocation5], [#allocation4]
  %s15 = sshll.u32 %s1, 4
  %s16 = int_to_ptr.vmem [resolvable:$true] %s15
  %18 = dma.vmem_to_smem %s16, 16, [#allocation6], [#allocation4]
  %s19 = sshll.u32 %s2, 4
  %s20 = int_to_ptr.vmem [resolvable:$true] %s19
  %22 = dma.vmem_to_smem %s20, 16, [#allocation7], [#allocation4]
  %s23 = sshll.u32 %s3, 4
  %s24 = int_to_ptr.vmem [resolvable:$true] %s23
  %26 = dma.vmem_to_smem %s24, 16, [#allocation8], [#allocation4]
  %27 = dma.done [#allocation4], 64
  %28 = sfence
  $region1: #{tpu_custom_call.1} parent=0
    #allocation9 [shape = 'u8[8192]{0}', space=vmem, size = 0x2000, scoped, tag = 'input window, operand 4']
    #allocation10 [shape = 's32[2]{0}', space=sflag, size = 0x8, scoped, tag = 'scoped memory for tpu_custom_call.1']
    #allocation11 [shape = 's32[2]{0}', space=sflag, size = 0x8, scoped, tag = 'scoped memory for tpu_custom_call.1']
    #allocation12 [shape = 'u8[32768]{0}', space=vmem, size = 0x8000, scoped, tag = 'input window, operand 5']
    #allocation13 [shape = 's32[2]{0}', space=sflag, size = 0x8, scoped, tag = 'scoped memory for tpu_custom_call.1']
    #allocation14 [shape = 'u8[32768]{0}', space=vmem, size = 0x8000, scoped, tag = 'input window, operand 6']
    #allocation15 [shape = 'u8[8192]{0}', space=vmem, size = 0x2000, scoped, tag = 'input window, operand 7, single buffered']
    #allocation16 [shape = 's32[1]{0}', space=sflag, size = 0x4, scoped, tag = 'scoped memory for tpu_custom_call.1']
    #allocation17 [shape = 'u8[8192]{0}', space=vmem, size = 0x2000, scoped, tag = 'output window, operand 0']
    %29 = vsyncpa [#allocation10], 0
    %s30 = scalar_lea.sflag [#allocation10], 1
    %31 = vsyncpa %s30, 0
    %32 = vsyncpa [#allocation13], 0
    %s33 = scalar_lea.sflag [#allocation13], 1
    %34 = vsyncpa %s33, 0
    %35 = vsyncpa [#allocation16], 0
    %36 = vsyncpa [#allocation11], 0
    %s37 = scalar_lea.sflag [#allocation11], 1
    %38 = vsyncpa %s37, 0
    loop: start=0, step=1, limit=4
    $region2: #{tpu_custom_call.1} parent=1 // loop_pre_header
      _
    $region3: #{tpu_custom_call.1} parent=1 // loop_header
      %s40 = sphi 0, %s44
      %p41 = scmp.ge.s32.totalorder %s40, 4
      %s47 = sphi 0, %s59
      %s48 = sphi 0, %s55
      %s49 = sphi 0, %s47
      %s50 = sphi 0, %s48
      %s51 = sphi 0, %s49
      %s52 = sphi 0, %s50
      %s62 = sphi 0, %s64
      %s65 = sphi 0, %s62
      %s66 = sphi 0, %s65
      %s82 = sphi 0, %s66
      %s100 = sphi 0, %s102
      %s103 = sphi 0, %s100
      %s104 = sphi 0, %s103
      %s120 = sphi 0, %s104
      %s138 = sphi 0, %s140
      %s141 = sphi 0, %s138
      %s142 = sphi 0, %s141
      %s158 = sphi 0, %s142
      %s162 = sphi 0, %s162
      %s164 = sphi 0, %s162
      %s165 = sphi 0, %s164
      %s179 = sphi 0, %s165
      %s185 = sphi 0, %s187
      %s188 = sphi 0, %s185
      %s189 = sphi 0, %s188
      %s205 = sphi 0, %s189
    $region4: #{tpu_custom_call.1} parent=1 // loop_header_branch
      %43 = sbr.rel (%p41) target = $region8
    $region5: #{tpu_custom_call.1} parent=1 // loop_body
      %s45 = ssub.s32 %s40, 1
      %s46 = ssub.s32 %s40, 2
      %s53 = sadd.s32 1, %s48
      %p54 = scmp.ge.s32.totalorder %s53, 1
      %s55 = scalar_select %p54, 0, %s53
      %s56 = sadd.s32 1, %s47
      %s57 = scalar_select %p54, %s56, %s47
      %p58 = scmp.ge.s32.totalorder %s57, 2
      %s59 = scalar_select %p58, 0, %s57
      %s60 = ssub.s32 %s47, %s59
      %p61 = scmp.eq.s32.totalorder %s60, 0
      %s63 = sadd.s32 %s62, 1
      %s64 = scalar_select %p61, %s62, %s63
      %p67 = pneg %p61
      %p68 = scmp.eq.s32.totalorder %s40, 1
      %p69 = por %p67, %p68
      %p70 = scmp.ne.s32.totalorder %s62, %s65
      %p71 = scmp.eq.s32.totalorder %s40, 0
      %p72 = por %p70, %p71
      %p73 = scmp.ne.s32.totalorder %s62, %s65
      %p74 = scmp.eq.s32.totalorder %s45, 1
      %p75 = por %p73, %p74
      %p76 = scmp.ne.s32.totalorder %s65, %s66
      %p77 = scmp.eq.s32.totalorder %s45, 0
      %p78 = por %p76, %p77
      %p79 = scmp.ne.s32.totalorder %s65, %s66
      %p80 = scmp.eq.s32.totalorder %s46, 1
      %p81 = por %p79, %p80
      %p83 = scmp.ne.s32.totalorder %s66, %s82
      %p84 = scmp.eq.s32.totalorder %s46, 0
      %p85 = por %p83, %p84
      %s86 = sld [smem:[#allocation5 + %s47]]
      %p87 = scmp.gt.s32.totalorder %s48, %s86
      %s88 = scalar_select %p87, %s48, %s86
      %s89 = sld [smem:[#allocation6 + %s47]]
      %p90 = scmp.lt.s32.totalorder %s88, %s89
      %s91 = scalar_select %p90, %s88, %s89
      %s92 = sld [smem:[#allocation5 + %s59]]
      %p93 = scmp.gt.s32.totalorder %s55, %s92
      %s94 = scalar_select %p93, %s55, %s92
      %s95 = sld [smem:[#allocation6 + %s59]]
      %p96 = scmp.lt.s32.totalorder %s94, %s95
      %s97 = scalar_select %p96, %s94, %s95
      %s98 = ssub.s32 %s91, %s97
      %p99 = scmp.eq.s32.totalorder %s98, 0
      %s101 = sadd.s32 %s100, 1
      %s102 = scalar_select %p99, %s100, %s101
      %p105 = pneg %p99
      %p106 = scmp.eq.s32.totalorder %s40, 1
      %p107 = por %p105, %p106
      %p108 = scmp.ne.s32.totalorder %s100, %s103
      %p109 = scmp.eq.s32.totalorder %s40, 0
      %p110 = por %p108, %p109
      %p111 = scmp.ne.s32.totalorder %s100, %s103
      %p112 = scmp.eq.s32.totalorder %s45, 1
      %p113 = por %p111, %p112
      %p114 = scmp.ne.s32.totalorder %s103, %s104
      %p115 = scmp.eq.s32.totalorder %s45, 0
      %p116 = por %p114, %p115
      %p117 = scmp.ne.s32.totalorder %s103, %s104
      %p118 = scmp.eq.s32.totalorder %s46, 1
      %p119 = por %p117, %p118
      %p121 = scmp.ne.s32.totalorder %s104, %s120
      %p122 = scmp.eq.s32.totalorder %s46, 0
      %p123 = por %p121, %p122
      %s124 = sld [smem:[#allocation7 + %s47]]
      %p125 = scmp.gt.s32.totalorder %s48, %s124
      %s126 = scalar_select %p125, %s48, %s124
      %s127 = sld [smem:[#allocation8 + %s47]]
      %p128 = scmp.lt.s32.totalorder %s126, %s127
      %s129 = scalar_select %p128, %s126, %s127
      %s130 = sld [smem:[#allocation7 + %s59]]
      %p131 = scmp.gt.s32.totalorder %s55, %s130
      %s132 = scalar_select %p131, %s55, %s130
      %s133 = sld [smem:[#allocation8 + %s59]]
      %p134 = scmp.lt.s32.totalorder %s132, %s133
      %s135 = scalar_select %p134, %s132, %s133
      %s136 = ssub.s32 %s129, %s135
      %p137 = scmp.eq.s32.totalorder %s136, 0
      %s139 = sadd.s32 %s138, 1
      %s140 = scalar_select %p137, %s138, %s139
      %p143 = pneg %p137
      %p144 = scmp.eq.s32.totalorder %s40, 1
      %p145 = por %p143, %p144
      %p146 = scmp.ne.s32.totalorder %s138, %s141
      %p147 = scmp.eq.s32.totalorder %s40, 0
      %p148 = por %p146, %p147
      %p149 = scmp.ne.s32.totalorder %s138, %s141
      %p150 = scmp.eq.s32.totalorder %s45, 1
      %p151 = por %p149, %p150
      %p152 = scmp.ne.s32.totalorder %s141, %s142
      %p153 = scmp.eq.s32.totalorder %s45, 0
      %p154 = por %p152, %p153
      %p155 = scmp.ne.s32.totalorder %s141, %s142
      %p156 = scmp.eq.s32.totalorder %s46, 1
      %p157 = por %p155, %p156
      %p159 = scmp.ne.s32.totalorder %s142, %s158
      %p160 = scmp.eq.s32.totalorder %s46, 0
      %p161 = por %p159, %p160
      %s163 = sadd.s32 %s162, 1
      %p166 = scmp.eq.s32.totalorder %s40, 1
      %p167 = scmp.ne.s32.totalorder %s162, %s164
      %p168 = scmp.eq.s32.totalorder %s40, 0
      %p169 = por %p167, %p168
      %p170 = scmp.ne.s32.totalorder %s162, %s164
      %p171 = scmp.eq.s32.totalorder %s45, 1
      %p172 = por %p170, %p171
      %p173 = scmp.ne.s32.totalorder %s164, %s165
      %p174 = scmp.eq.s32.totalorder %s45, 0
      %p175 = por %p173, %p174
      %p176 = scmp.ne.s32.totalorder %s164, %s165
      %p177 = scmp.eq.s32.totalorder %s46, 1
      %p178 = por %p176, %p177
      %p180 = scmp.ne.s32.totalorder %s165, %s179
      %p181 = scmp.eq.s32.totalorder %s46, 0
      %p182 = por %p180, %p181
      %s183 = ssub.s32 %s47, %s59
      %p184 = scmp.eq.s32.totalorder %s183, 0
      %s186 = sadd.s32 %s185, 1
      %s187 = scalar_select %p184, %s185, %s186
      %p190 = pneg %p184
      %p191 = scmp.eq.s32.totalorder %s40, 1
      %p192 = por %p190, %p191
      %p193 = scmp.ne.s32.totalorder %s185, %s188
      %p194 = scmp.eq.s32.totalorder %s40, 0
      %p195 = por %p193, %p194
      %p196 = scmp.ne.s32.totalorder %s185, %s188
      %p197 = scmp.eq.s32.totalorder %s45, 1
      %p198 = por %p196, %p197
      %p199 = scmp.ne.s32.totalorder %s188, %s189
      %p200 = scmp.eq.s32.totalorder %s45, 0
      %p201 = por %p199, %p200
      %p202 = scmp.ne.s32.totalorder %s188, %s189
      %p203 = scmp.eq.s32.totalorder %s46, 1
      %p204 = por %p202, %p203
      %p206 = scmp.ne.s32.totalorder %s189, %s205
      %p207 = scmp.eq.s32.totalorder %s46, 0
      %p208 = por %p206, %p207
      %p209 = scmp.le.s32.totalorder 1, %s40
      %p210 = scmp.lt.s32.totalorder %s40, 3
      %p211 = pnand %p209, %p210
      %p212 = pneg %p211
      // Predicated region
      $region9: #{tpu_custom_call.1} parent=5 // pred_check
        _
      $region10: #{tpu_custom_call.1} parent=5 // pred_check_branch
        %214 = sbr.rel (%p211) target = $region12
      $region11: #{tpu_custom_call.1} parent=5 // pred_region
        %s215 = ssub.s32 %s40, 1
        // Predicated region
        $region13: #{tpu_custom_call.1} parent=11 // pred_check
          %p216 = pneg %p175
        $region14: #{tpu_custom_call.1} parent=11 // pred_check_branch
          %218 = sbr.rel (%p216) target = $region16
        $region15: #{tpu_custom_call.1} parent=11 // pred_region
          %s220 = ssub.s32 256, 256
          %221 = vsyncadd [#allocation16], %s220
          %s222 = sshll.u32 [#allocation15], 4
          %s223 = int_to_ptr.vmem [resolvable:$true] %s222
          %228 = dma.hbm_to_vmem [thread:$0]  %s7, 256, %s223, [#allocation16], 128, 128, 8
        $region16: #{tpu_custom_call.1} parent=11 // pred_fallthru
          _
      $region12: #{tpu_custom_call.1} parent=5 // pred_fallthru
        _
      %p229 = scmp.lt.s32.totalorder %s40, 2
      // Predicated region
      $region17: #{tpu_custom_call.1} parent=5 // pred_check
        %p230 = pneg %p229
      $region18: #{tpu_custom_call.1} parent=5 // pred_check_branch
        %232 = sbr.rel (%p230) target = $region20
      $region19: #{tpu_custom_call.1} parent=5 // pred_region
        // Predicated region
        $region21: #{tpu_custom_call.1} parent=19 // pred_check
          %p233 = pneg %p72
        $region22: #{tpu_custom_call.1} parent=19 // pred_check_branch
          %235 = sbr.rel (%p233) target = $region24
        $region23: #{tpu_custom_call.1} parent=19 // pred_region
          %s236 = sand.u32 %s62, 1
          %s237 = scalar_lea.sflag [#allocation10], %s236
          %s238 = sand.u32 %s62, 1
          %s239 = smul.addr %s238, 8
          %s240 = scalar_lea.vmem [#allocation9], %s239
          %s242 = ssub.s32 128, 128
          %243 = vsyncadd %s237, %s242
          %s244 = smul.addr %s47, 128
          %s245 = scalar_lea.hbm %s4, %s244
          %s247 = sshll.u32 %s240, 4
          %s248 = int_to_ptr.vmem [resolvable:$true] %s247
          %250 = dma.hbm_to_vmem [thread:$0]  %s245, 128, %s248, %s237
        $region24: #{tpu_custom_call.1} parent=19 // pred_fallthru
          _
        // Predicated region
        $region25: #{tpu_custom_call.1} parent=19 // pred_check
          %p251 = pneg %p110
        $region26: #{tpu_custom_call.1} parent=19 // pred_check_branch
          %253 = sbr.rel (%p251) target = $region28
        $region27: #{tpu_custom_call.1} parent=19 // pred_region
          %s254 = sand.u32 %s40, 1
          %s255 = scalar_lea.sflag [#allocation13], %s254
          %s256 = sand.u32 %s100, 1
          %s257 = smul.addr %s256, 32
          %s258 = scalar_lea.vmem [#allocation12], %s257
          %s259 = sld [smem:[#allocation5 + %s47]]
          %p260 = scmp.gt.s32.totalorder %s48, %s259
          %s261 = scalar_select %p260, %s48, %s259
          %s262 = sld [smem:[#allocation6 + %s47]]
          %p263 = scmp.lt.s32.totalorder %s261, %s262
          %s264 = scalar_select %p263, %s261, %s262
          %s265 = smul.u32 4, %s264
          %s267 = ssub.s32 512, 512
          %268 = vsyncadd %s255, %s267
          %s269 = smul.addr %s265, 128
          %s270 = scalar_lea.hbm %s5, %s269
          %s271 = sshll.u32 %s258, 4
          %s272 = int_to_ptr.vmem [resolvable:$true] %s271
          %277 = dma.hbm_to_vmem [thread:$0]  %s270, 512, %s272, %s255, 128, 128, 8
        $region28: #{tpu_custom_call.1} parent=19 // pred_fallthru
          _
        // Predicated region
        $region29: #{tpu_custom_call.1} parent=19 // pred_check
          %p278 = pneg %p148
        $region30: #{tpu_custom_call.1} parent=19 // pred_check_branch
          %280 = sbr.rel (%p278) target = $region32
        $region31: #{tpu_custom_call.1} parent=19 // pred_region
          %s281 = sand.u32 %s40, 1
          %s282 = scalar_lea.sflag [#allocation13], %s281
          %s283 = sand.u32 %s138, 1
          %s284 = smul.addr %s283, 32
          %s285 = scalar_lea.vmem [#allocation14], %s284
          %s286 = sld [smem:[#allocation7 + %s47]]
          %p287 = scmp.gt.s32.totalorder %s48, %s286
          %s288 = scalar_select %p287, %s48, %s286
          %s289 = sld [smem:[#allocation8 + %s47]]
          %p290 = scmp.lt.s32.totalorder %s288, %s289
          %s291 = scalar_select %p290, %s288, %s289
          %s292 = smul.u32 4, %s291
          %s294 = ssub.s32 512, 512
          %295 = vsyncadd %s282, %s294
          %s296 = smul.addr %s292, 128
          %s297 = scalar_lea.hbm %s6, %s296
          %s298 = sshll.u32 %s285, 4
          %s299 = int_to_ptr.vmem [resolvable:$true] %s298
          %304 = dma.hbm_to_vmem [thread:$0]  %s297, 512, %s299, %s282, 128, 128, 8
        $region32: #{tpu_custom_call.1} parent=19 // pred_fallthru
          _
      $region20: #{tpu_custom_call.1} parent=5 // pred_fallthru
        _
      %p305 = scmp.le.s32.totalorder 1, %s40
      %p306 = scmp.lt.s32.totalorder %s40, 3
      %p307 = pnand %p305, %p306
      %p308 = pneg %p307
      // Predicated region
      $region33: #{tpu_custom_call.1} parent=5 // pred_check
        _
      $region34: #{tpu_custom_call.1} parent=5 // pred_check_branch
        %310 = sbr.rel (%p307) target = $region36
      $region35: #{tpu_custom_call.1} parent=5 // pred_region
        %s311 = ssub.s32 %s40, 1
        %s312 = sand.u32 %s65, 1
        %s313 = scalar_lea.sflag [#allocation10], %s312
        %s314 = sand.u32 %s65, 1
        %s315 = smul.addr %s314, 8
        %s316 = scalar_lea.vmem [#allocation9], %s315
        // Predicated region
        $region37: #{tpu_custom_call.1} parent=35 // pred_check
          %p317 = pneg %p78
        $region38: #{tpu_custom_call.1} parent=35 // pred_check_branch
          %319 = sbr.rel (%p317) target = $region40
        $region39: #{tpu_custom_call.1} parent=35 // pred_region
          %320 = dma.done %s313, 128
        $region40: #{tpu_custom_call.1} parent=35 // pred_fallthru
          _
        %s321 = sand.u32 %s45, 1
        %s322 = scalar_lea.sflag [#allocation13], %s321
        %s323 = sand.u32 %s103, 1
        %s324 = smul.addr %s323, 32
        %s325 = scalar_lea.vmem [#allocation12], %s324
        // Predicated region
        $region41: #{tpu_custom_call.1} parent=35 // pred_check
          %p326 = pneg %p116
        $region42: #{tpu_custom_call.1} parent=35 // pred_check_branch
          %328 = sbr.rel (%p326) target = $region44
        $region43: #{tpu_custom_call.1} parent=35 // pred_region
          %329 = dma.done %s322, 512
        $region44: #{tpu_custom_call.1} parent=35 // pred_fallthru
          _
        %s330 = sand.u32 %s45, 1
        %s331 = scalar_lea.sflag [#allocation13], %s330
        %s332 = sand.u32 %s141, 1
        %s333 = smul.addr %s332, 32
        %s334 = scalar_lea.vmem [#allocation14], %s333
        // Predicated region
        $region45: #{tpu_custom_call.1} parent=35 // pred_check
          %p335 = pneg %p154
        $region46: #{tpu_custom_call.1} parent=35 // pred_check_branch
          %337 = sbr.rel (%p335) target = $region48
        $region47: #{tpu_custom_call.1} parent=35 // pred_region
          %338 = dma.done %s331, 512
        $region48: #{tpu_custom_call.1} parent=35 // pred_fallthru
          _
        // Predicated region
        $region49: #{tpu_custom_call.1} parent=35 // pred_check
          %p339 = pneg %p175
        $region50: #{tpu_custom_call.1} parent=35 // pred_check_branch
          %341 = sbr.rel (%p339) target = $region52
        $region51: #{tpu_custom_call.1} parent=35 // pred_region
          %342 = dma.done [#allocation16], 256
        $region52: #{tpu_custom_call.1} parent=35 // pred_fallthru
          _
        %s343 = sand.u32 %s65, 1
        %s344 = scalar_lea.sflag [#allocation10], %s343
        %s345 = sand.u32 %s65, 1
        %s346 = smul.addr %s345, 8
        %s347 = scalar_lea.vmem [#allocation9], %s346
        %p348 = pneg %p78
        %p349 = pneg %p75
        %s350 = sand.u32 %s45, 1
        %s351 = scalar_lea.sflag [#allocation13], %s350
        %s352 = sand.u32 %s103, 1
        %s353 = smul.addr %s352, 32
        %s354 = scalar_lea.vmem [#allocation12], %s353
        %p355 = pneg %p116
        %p356 = pneg %p113
        %s357 = sand.u32 %s45, 1
        %s358 = scalar_lea.sflag [#allocation13], %s357
        %s359 = sand.u32 %s141, 1
        %s360 = smul.addr %s359, 32
        %s361 = scalar_lea.vmem [#allocation14], %s360
        %p362 = pneg %p154
        %p363 = pneg %p151
        %p364 = pneg %p175
        %p365 = pneg %p172
        %p366 = pneg %p201
        %p367 = pneg %p198
        %s368 = sand.u32 %s188, 1
        %s369 = scalar_lea.sflag [#allocation11], %s368
        %s370 = sand.u32 %s188, 1
        %s371 = smul.addr %s370, 8
        %s372 = scalar_lea.vmem [#allocation17], %s371
        %s373 = sld [smem:[#allocation5 + %s49]]
        %p374 = scmp.gt.s32.totalorder %s50, %s373
        %s375 = scalar_select %p374, %s50, %s373
        %s376 = sld [smem:[#allocation6 + %s49]]
        %p377 = scmp.lt.s32.totalorder %s375, %s376
        %s378 = scalar_select %p377, %s375, %s376
        %s379 = smul.u32 4, %s378
        %s380 = sld [smem:[#allocation7 + %s49]]
        %p381 = scmp.gt.s32.totalorder %s50, %s380
        %s382 = scalar_select %p381, %s50, %s380
        %s383 = sld [smem:[#allocation8 + %s49]]
        %p384 = scmp.lt.s32.totalorder %s382, %s383
        %s385 = scalar_select %p384, %s382, %s383
        %s386 = smul.u32 4, %s385
        %p387 = scmp.eq.s32.totalorder %s50, 0
        // Predicated region
        $region53: #{tpu_custom_call.1} parent=35 // pred_check
          %p388 = pneg %p387
        $region54: #{tpu_custom_call.1} parent=35 // pred_check_branch
          %390 = sbr.rel (%p388) target = $region56
        $region55: #{tpu_custom_call.1} parent=35 // pred_region
          %391 = vst [vmem:[#allocation2] sm:$0xff] 0
          %392 = vst [vmem:[#allocation2 + $0x8] sm:$0xff] 0
          %393 = vst [vmem:[#allocation2 + $0x10] sm:$0xff] 0
          %394 = vst [vmem:[#allocation2 + $0x18] sm:$0xff] 0
          %395 = vst [vmem:[#allocation2 + $0x20] sm:$0xff] 0
          %396 = vst [vmem:[#allocation2 + $0x28] sm:$0xff] 0
          %397 = vst [vmem:[#allocation2 + $0x30] sm:$0xff] 0
          %398 = vst [vmem:[#allocation2 + $0x38] sm:$0xff] 0
          %399 = vst [vmem:[#allocation3] sm:$0xff] 0
          %400 = vst [vmem:[#allocation3 + $0x8] sm:$0xff] 0
          %401 = vst [vmem:[#allocation3 + $0x10] sm:$0xff] 0
          %402 = vst [vmem:[#allocation3 + $0x18] sm:$0xff] 0
          %403 = vst [vmem:[#allocation3 + $0x20] sm:$0xff] 0
          %404 = vst [vmem:[#allocation3 + $0x28] sm:$0xff] 0
          %405 = vst [vmem:[#allocation3 + $0x30] sm:$0xff] 0
          %406 = vst [vmem:[#allocation3 + $0x38] sm:$0xff] 0
        $region56: #{tpu_custom_call.1} parent=35 // pred_fallthru
          _
        %s407 = smul.u32 %s49, 8
        %v408 = vstv %s407
        %v409 = vadd.s32 %v408, 1
        %v410 = vadd.s32 %v408, 2
        %v411 = vadd.s32 %v408, 3
        %v412 = vadd.s32 %v408, 4
        %v413 = vadd.s32 %v408, 5
        %v414 = vadd.s32 %v408, 6
        %v415 = vadd.s32 %v408, 7
        %s416 = sld [smem:[#allocation5 + %s49]]
        %p417 = scmp.ge.s32.totalorder %s50, %s416
        %s418 = sld [smem:[#allocation6 + %s49]]
        %p419 = scmp.le.s32.totalorder %s50, %s418
        %p420 = pnand %p417, %p419
        %p421 = pneg %p420
        // Predicated region
        $region57: #{tpu_custom_call.1} parent=35 // pred_check
          _
        $region58: #{tpu_custom_call.1} parent=35 // pred_check_branch
          %423 = sbr.rel (%p420) target = $region60
        $region59: #{tpu_custom_call.1} parent=35 // pred_region
          %v424 = vld [vmem:[%s325] sm:$0xff]
          %v425 = vld [vmem:[%s325 + $0x8] sm:$0xff]
          %v426 = vld [vmem:[%s325 + $0x10] sm:$0xff]
          %v427 = vld [vmem:[%s325 + $0x18] sm:$0xff]
          %v428 = vld [vmem:[#allocation2] sm:$0xff]
          %v429 = vld [vmem:[#allocation2 + $0x8] sm:$0xff]
          %v430 = vld [vmem:[#allocation2 + $0x10] sm:$0xff]
          %v431 = vld [vmem:[#allocation2 + $0x18] sm:$0xff]
          %v432 = vld [vmem:[#allocation2 + $0x20] sm:$0xff]
          %v433 = vld [vmem:[#allocation2 + $0x28] sm:$0xff]
          %v434 = vld [vmem:[#allocation2 + $0x30] sm:$0xff]
          %v435 = vld [vmem:[#allocation2 + $0x38] sm:$0xff]
          %vm436 = vcmp.eq.s32.totalorder %v424, %v408
          %vm437 = vcmp.eq.s32.totalorder %v424, %v409
          %vm438 = vcmp.eq.s32.totalorder %v424, %v410
          %vm439 = vcmp.eq.s32.totalorder %v424, %v411
          %vm440 = vcmp.eq.s32.totalorder %v424, %v412
          %vm441 = vcmp.eq.s32.totalorder %v424, %v413
          %vm442 = vcmp.eq.s32.totalorder %v424, %v414
          %vm443 = vcmp.eq.s32.totalorder %v424, %v415
          %v444 = vsel %vm436, 1, 0
          %v445 = vsel %vm437, 1, 0
          %v446 = vsel %vm438, 1, 0
          %v447 = vsel %vm439, 1, 0
          %v448 = vsel %vm440, 1, 0
          %v449 = vsel %vm441, 1, 0
          %v450 = vsel %vm442, 1, 0
          %v451 = vsel %vm443, 1, 0
          %v452 = vadd.s32 %v428, %v444
          %v453 = vadd.s32 %v429, %v445
          %v454 = vadd.s32 %v430, %v446
          %v455 = vadd.s32 %v431, %v447
          %v456 = vadd.s32 %v432, %v448
          %v457 = vadd.s32 %v433, %v449
          %v458 = vadd.s32 %v434, %v450
          %v459 = vadd.s32 %v435, %v451
          %vm460 = vcmp.eq.s32.totalorder %v425, %v408
          %vm461 = vcmp.eq.s32.totalorder %v425, %v409
          %vm462 = vcmp.eq.s32.totalorder %v425, %v410
          %vm463 = vcmp.eq.s32.totalorder %v425, %v411
          %vm464 = vcmp.eq.s32.totalorder %v425, %v412
          %vm465 = vcmp.eq.s32.totalorder %v425, %v413
          %vm466 = vcmp.eq.s32.totalorder %v425, %v414
          %vm467 = vcmp.eq.s32.totalorder %v425, %v415
          %v468 = vsel %vm460, 1, 0
          %v469 = vsel %vm461, 1, 0
          %v470 = vsel %vm462, 1, 0
          %v471 = vsel %vm463, 1, 0
          %v472 = vsel %vm464, 1, 0
          %v473 = vsel %vm465, 1, 0
          %v474 = vsel %vm466, 1, 0
          %v475 = vsel %vm467, 1, 0
          %v476 = vadd.s32 %v452, %v468
          %v477 = vadd.s32 %v453, %v469
          %v478 = vadd.s32 %v454, %v470
          %v479 = vadd.s32 %v455, %v471
          %v480 = vadd.s32 %v456, %v472
          %v481 = vadd.s32 %v457, %v473
          %v482 = vadd.s32 %v458, %v474
          %v483 = vadd.s32 %v459, %v475
          %vm484 = vcmp.eq.s32.totalorder %v426, %v408
          %vm485 = vcmp.eq.s32.totalorder %v426, %v409
          %vm486 = vcmp.eq.s32.totalorder %v426, %v410
          %vm487 = vcmp.eq.s32.totalorder %v426, %v411
          %vm488 = vcmp.eq.s32.totalorder %v426, %v412
          %vm489 = vcmp.eq.s32.totalorder %v426, %v413
          %vm490 = vcmp.eq.s32.totalorder %v426, %v414
          %vm491 = vcmp.eq.s32.totalorder %v426, %v415
          %v492 = vsel %vm484, 1, 0
          %v493 = vsel %vm485, 1, 0
          %v494 = vsel %vm486, 1, 0
          %v495 = vsel %vm487, 1, 0
          %v496 = vsel %vm488, 1, 0
          %v497 = vsel %vm489, 1, 0
          %v498 = vsel %vm490, 1, 0
          %v499 = vsel %vm491, 1, 0
          %v500 = vadd.s32 %v476, %v492
          %v501 = vadd.s32 %v477, %v493
          %v502 = vadd.s32 %v478, %v494
          %v503 = vadd.s32 %v479, %v495
          %v504 = vadd.s32 %v480, %v496
          %v505 = vadd.s32 %v481, %v497
          %v506 = vadd.s32 %v482, %v498
          %v507 = vadd.s32 %v483, %v499
          %vm508 = vcmp.eq.s32.totalorder %v427, %v408
          %vm509 = vcmp.eq.s32.totalorder %v427, %v409
          %vm510 = vcmp.eq.s32.totalorder %v427, %v410
          %vm511 = vcmp.eq.s32.totalorder %v427, %v411
          %vm512 = vcmp.eq.s32.totalorder %v427, %v412
          %vm513 = vcmp.eq.s32.totalorder %v427, %v413
          %vm514 = vcmp.eq.s32.totalorder %v427, %v414
          %vm515 = vcmp.eq.s32.totalorder %v427, %v415
          %v516 = vsel %vm508, 1, 0
          %v517 = vsel %vm509, 1, 0
          %v518 = vsel %vm510, 1, 0
          %v519 = vsel %vm511, 1, 0
          %v520 = vsel %vm512, 1, 0
          %v521 = vsel %vm513, 1, 0
          %v522 = vsel %vm514, 1, 0
          %v523 = vsel %vm515, 1, 0
          %v524 = vadd.s32 %v500, %v516
          %v525 = vadd.s32 %v501, %v517
          %v526 = vadd.s32 %v502, %v518
          %v527 = vadd.s32 %v503, %v519
          %v528 = vadd.s32 %v504, %v520
          %v529 = vadd.s32 %v505, %v521
          %v530 = vadd.s32 %v506, %v522
          %v531 = vadd.s32 %v507, %v523
          %532 = vst [vmem:[#allocation2] sm:$0xff] %v524
          %533 = vst [vmem:[#allocation2 + $0x8] sm:$0xff] %v525
          %534 = vst [vmem:[#allocation2 + $0x10] sm:$0xff] %v526
          %535 = vst [vmem:[#allocation2 + $0x18] sm:$0xff] %v527
          %536 = vst [vmem:[#allocation2 + $0x20] sm:$0xff] %v528
          %537 = vst [vmem:[#allocation2 + $0x28] sm:$0xff] %v529
          %538 = vst [vmem:[#allocation2 + $0x30] sm:$0xff] %v530
          %539 = vst [vmem:[#allocation2 + $0x38] sm:$0xff] %v531
        $region60: #{tpu_custom_call.1} parent=35 // pred_fallthru
          _
        %s540 = sld [smem:[#allocation7 + %s49]]
        %p541 = scmp.ge.s32.totalorder %s50, %s540
        %s542 = sld [smem:[#allocation8 + %s49]]
        %p543 = scmp.le.s32.totalorder %s50, %s542
        %p544 = pnand %p541, %p543
        %p545 = pneg %p544
        // Predicated region
        $region61: #{tpu_custom_call.1} parent=35 // pred_check
          _
        $region62: #{tpu_custom_call.1} parent=35 // pred_check_branch
          %547 = sbr.rel (%p544) target = $region64
        $region63: #{tpu_custom_call.1} parent=35 // pred_region
          %v548 = vld [vmem:[%s334] sm:$0xff]
          %v549 = vld [vmem:[%s334 + $0x8] sm:$0xff]
          %v550 = vld [vmem:[%s334 + $0x10] sm:$0xff]
          %v551 = vld [vmem:[%s334 + $0x18] sm:$0xff]
          %v552 = vld [vmem:[#allocation3] sm:$0xff]
          %v553 = vld [vmem:[#allocation3 + $0x8] sm:$0xff]
          %v554 = vld [vmem:[#allocation3 + $0x10] sm:$0xff]
          %v555 = vld [vmem:[#allocation3 + $0x18] sm:$0xff]
          %v556 = vld [vmem:[#allocation3 + $0x20] sm:$0xff]
          %v557 = vld [vmem:[#allocation3 + $0x28] sm:$0xff]
          %v558 = vld [vmem:[#allocation3 + $0x30] sm:$0xff]
          %v559 = vld [vmem:[#allocation3 + $0x38] sm:$0xff]
          %vm560 = vcmp.eq.s32.totalorder %v548, %v408
          %vm561 = vcmp.eq.s32.totalorder %v548, %v409
          %vm562 = vcmp.eq.s32.totalorder %v548, %v410
          %vm563 = vcmp.eq.s32.totalorder %v548, %v411
          %vm564 = vcmp.eq.s32.totalorder %v548, %v412
          %vm565 = vcmp.eq.s32.totalorder %v548, %v413
          %vm566 = vcmp.eq.s32.totalorder %v548, %v414
          %vm567 = vcmp.eq.s32.totalorder %v548, %v415
          %v568 = vsel %vm560, 1, 0
          %v569 = vsel %vm561, 1, 0
          %v570 = vsel %vm562, 1, 0
          %v571 = vsel %vm563, 1, 0
          %v572 = vsel %vm564, 1, 0
          %v573 = vsel %vm565, 1, 0
          %v574 = vsel %vm566, 1, 0
          %v575 = vsel %vm567, 1, 0
          %v576 = vadd.s32 %v552, %v568
          %v577 = vadd.s32 %v553, %v569
          %v578 = vadd.s32 %v554, %v570
          %v579 = vadd.s32 %v555, %v571
          %v580 = vadd.s32 %v556, %v572
          %v581 = vadd.s32 %v557, %v573
          %v582 = vadd.s32 %v558, %v574
          %v583 = vadd.s32 %v559, %v575
          %vm584 = vcmp.eq.s32.totalorder %v549, %v408
          %vm585 = vcmp.eq.s32.totalorder %v549, %v409
          %vm586 = vcmp.eq.s32.totalorder %v549, %v410
          %vm587 = vcmp.eq.s32.totalorder %v549, %v411
          %vm588 = vcmp.eq.s32.totalorder %v549, %v412
          %vm589 = vcmp.eq.s32.totalorder %v549, %v413
          %vm590 = vcmp.eq.s32.totalorder %v549, %v414
          %vm591 = vcmp.eq.s32.totalorder %v549, %v415
          %v592 = vsel %vm584, 1, 0
          %v593 = vsel %vm585, 1, 0
          %v594 = vsel %vm586, 1, 0
          %v595 = vsel %vm587, 1, 0
          %v596 = vsel %vm588, 1, 0
          %v597 = vsel %vm589, 1, 0
          %v598 = vsel %vm590, 1, 0
          %v599 = vsel %vm591, 1, 0
          %v600 = vadd.s32 %v576, %v592
          %v601 = vadd.s32 %v577, %v593
          %v602 = vadd.s32 %v578, %v594
          %v603 = vadd.s32 %v579, %v595
          %v604 = vadd.s32 %v580, %v596
          %v605 = vadd.s32 %v581, %v597
          %v606 = vadd.s32 %v582, %v598
          %v607 = vadd.s32 %v583, %v599
          %vm608 = vcmp.eq.s32.totalorder %v550, %v408
          %vm609 = vcmp.eq.s32.totalorder %v550, %v409
          %vm610 = vcmp.eq.s32.totalorder %v550, %v410
          %vm611 = vcmp.eq.s32.totalorder %v550, %v411
          %vm612 = vcmp.eq.s32.totalorder %v550, %v412
          %vm613 = vcmp.eq.s32.totalorder %v550, %v413
          %vm614 = vcmp.eq.s32.totalorder %v550, %v414
          %vm615 = vcmp.eq.s32.totalorder %v550, %v415
          %v616 = vsel %vm608, 1, 0
          %v617 = vsel %vm609, 1, 0
          %v618 = vsel %vm610, 1, 0
          %v619 = vsel %vm611, 1, 0
          %v620 = vsel %vm612, 1, 0
          %v621 = vsel %vm613, 1, 0
          %v622 = vsel %vm614, 1, 0
          %v623 = vsel %vm615, 1, 0
          %v624 = vadd.s32 %v600, %v616
          %v625 = vadd.s32 %v601, %v617
          %v626 = vadd.s32 %v602, %v618
          %v627 = vadd.s32 %v603, %v619
          %v628 = vadd.s32 %v604, %v620
          %v629 = vadd.s32 %v605, %v621
          %v630 = vadd.s32 %v606, %v622
          %v631 = vadd.s32 %v607, %v623
          %vm632 = vcmp.eq.s32.totalorder %v551, %v408
          %vm633 = vcmp.eq.s32.totalorder %v551, %v409
          %vm634 = vcmp.eq.s32.totalorder %v551, %v410
          %vm635 = vcmp.eq.s32.totalorder %v551, %v411
          %vm636 = vcmp.eq.s32.totalorder %v551, %v412
          %vm637 = vcmp.eq.s32.totalorder %v551, %v413
          %vm638 = vcmp.eq.s32.totalorder %v551, %v414
          %vm639 = vcmp.eq.s32.totalorder %v551, %v415
          %v640 = vsel %vm632, 1, 0
          %v641 = vsel %vm633, 1, 0
          %v642 = vsel %vm634, 1, 0
          %v643 = vsel %vm635, 1, 0
          %v644 = vsel %vm636, 1, 0
          %v645 = vsel %vm637, 1, 0
          %v646 = vsel %vm638, 1, 0
          %v647 = vsel %vm639, 1, 0
          %v648 = vadd.s32 %v624, %v640
          %v649 = vadd.s32 %v625, %v641
          %v650 = vadd.s32 %v626, %v642
          %v651 = vadd.s32 %v627, %v643
          %v652 = vadd.s32 %v628, %v644
          %v653 = vadd.s32 %v629, %v645
          %v654 = vadd.s32 %v630, %v646
          %v655 = vadd.s32 %v631, %v647
          %656 = vst [vmem:[#allocation3] sm:$0xff] %v648
          %657 = vst [vmem:[#allocation3 + $0x8] sm:$0xff] %v649
          %658 = vst [vmem:[#allocation3 + $0x10] sm:$0xff] %v650
          %659 = vst [vmem:[#allocation3 + $0x18] sm:$0xff] %v651
          %660 = vst [vmem:[#allocation3 + $0x20] sm:$0xff] %v652
          %661 = vst [vmem:[#allocation3 + $0x28] sm:$0xff] %v653
          %662 = vst [vmem:[#allocation3 + $0x30] sm:$0xff] %v654
          %663 = vst [vmem:[#allocation3 + $0x38] sm:$0xff] %v655
        $region64: #{tpu_custom_call.1} parent=35 // pred_fallthru
          _
        // Predicated region
        $region65: #{tpu_custom_call.1} parent=35 // pred_check
          %p664 = pneg %p387
        $region66: #{tpu_custom_call.1} parent=35 // pred_check_branch
          %666 = sbr.rel (%p664) target = $region68
        $region67: #{tpu_custom_call.1} parent=35 // pred_region
          %v667 = vld [vmem:[#allocation2] sm:$0xff]
          %v668 = vld [vmem:[#allocation2 + $0x8] sm:$0xff]
          %v669 = vld [vmem:[#allocation2 + $0x10] sm:$0xff]
          %v670 = vld [vmem:[#allocation2 + $0x18] sm:$0xff]
          %v671 = vld [vmem:[#allocation2 + $0x20] sm:$0xff]
          %v672 = vld [vmem:[#allocation2 + $0x28] sm:$0xff]
          %v673 = vld [vmem:[#allocation2 + $0x30] sm:$0xff]
          %v674 = vld [vmem:[#allocation2 + $0x38] sm:$0xff]
          %v675 = vrot.slane %v667, 4
          %v676 = vadd.s32 %v667, %v675
          %v677 = vrot.slane %v676, 2
          %v678 = vadd.s32 %v676, %v677
          %v679 = vrot.slane %v678, 1
          %v680 = vadd.s32 %v678, %v679
          %v681 = vrot.slane %v668, 4
          %v682 = vadd.s32 %v668, %v681
          %v683 = vrot.slane %v682, 2
          %v684 = vadd.s32 %v682, %v683
          %v685 = vrot.slane %v684, 1
          %v686 = vadd.s32 %v684, %v685
          %v687 = vrot.slane %v669, 4
          %v688 = vadd.s32 %v669, %v687
          %v689 = vrot.slane %v688, 2
          %v690 = vadd.s32 %v688, %v689
          %v691 = vrot.slane %v690, 1
          %v692 = vadd.s32 %v690, %v691
          %v693 = vrot.slane %v670, 4
          %v694 = vadd.s32 %v670, %v693
          %v695 = vrot.slane %v694, 2
          %v696 = vadd.s32 %v694, %v695
          %v697 = vrot.slane %v696, 1
          %v698 = vadd.s32 %v696, %v697
          %v699 = vrot.slane %v671, 4
          %v700 = vadd.s32 %v671, %v699
          %v701 = vrot.slane %v700, 2
          %v702 = vadd.s32 %v700, %v701
          %v703 = vrot.slane %v702, 1
          %v704 = vadd.s32 %v702, %v703
          %v705 = vrot.slane %v672, 4
          %v706 = vadd.s32 %v672, %v705
          %v707 = vrot.slane %v706, 2
          %v708 = vadd.s32 %v706, %v707
          %v709 = vrot.slane %v708, 1
          %v710 = vadd.s32 %v708, %v709
          %v711 = vrot.slane %v673, 4
          %v712 = vadd.s32 %v673, %v711
          %v713 = vrot.slane %v712, 2
          %v714 = vadd.s32 %v712, %v713
          %v715 = vrot.slane %v714, 1
          %v716 = vadd.s32 %v714, %v715
          %v717 = vrot.slane %v674, 4
          %v718 = vadd.s32 %v674, %v717
          %v719 = vrot.slane %v718, 2
          %v720 = vadd.s32 %v718, %v719
          %v721 = vrot.slane %v720, 1
          %v722 = vadd.s32 %v720, %v721
          %vm723 = vcmask 1041409
          %v724 = vsel %vm723, %v686, %v680
          %vm725 = vcmask 1042434
          %v726 = vsel %vm725, %v692, %v724
          %vm727 = vcmask 1043459
          %v728 = vsel %vm727, %v698, %v726
          %vm729 = vcmask 1044484
          %v730 = vsel %vm729, %v704, %v728
          %vm731 = vcmask 1045509
          %v732 = vsel %vm731, %v710, %v730
          %vm733 = vcmask 1046534
          %v734 = vsel %vm733, %v716, %v732
          %vm735 = vcmask 1047559
          %v736 = vsel %vm735, %v722, %v734
          %v737 = vand.u32 %v736, 65535
          %v738 = vshrl.u32 %v736, 16
          %v739 = vcvt.s32.f32 %v737
          %v740 = vcvt.s32.f32 %v738
          %741 = vadd.xlane.f32.xlu0 %v739
          %v742 = vpop.xlane.xlu0 %741
          %743 = vadd.xlane.f32.xlu0 %v740
          %v744 = vpop.xlane.xlu0 %743
          %v745 = vcvt.f32.s32 %v742
          %v746 = vcvt.f32.s32 %v744
          %v747 = vshll.u32 %v746, 16
          %v748 = vadd.s32 %v747, %v745
          %v749 = vld [vmem:[#allocation3] sm:$0xff]
          %v750 = vld [vmem:[#allocation3 + $0x8] sm:$0xff]
          %v751 = vld [vmem:[#allocation3 + $0x10] sm:$0xff]
          %v752 = vld [vmem:[#allocation3 + $0x18] sm:$0xff]
          %v753 = vld [vmem:[#allocation3 + $0x20] sm:$0xff]
          %v754 = vld [vmem:[#allocation3 + $0x28] sm:$0xff]
          %v755 = vld [vmem:[#allocation3 + $0x30] sm:$0xff]
          %v756 = vld [vmem:[#allocation3 + $0x38] sm:$0xff]
          %v757 = vrot.slane %v749, 4
          %v758 = vadd.s32 %v749, %v757
          %v759 = vrot.slane %v758, 2
          %v760 = vadd.s32 %v758, %v759
          %v761 = vrot.slane %v760, 1
          %v762 = vadd.s32 %v760, %v761
          %v763 = vrot.slane %v750, 4
          %v764 = vadd.s32 %v750, %v763
          %v765 = vrot.slane %v764, 2
          %v766 = vadd.s32 %v764, %v765
          %v767 = vrot.slane %v766, 1
          %v768 = vadd.s32 %v766, %v767
          %v769 = vrot.slane %v751, 4
          %v770 = vadd.s32 %v751, %v769
          %v771 = vrot.slane %v770, 2
          %v772 = vadd.s32 %v770, %v771
          %v773 = vrot.slane %v772, 1
          %v774 = vadd.s32 %v772, %v773
          %v775 = vrot.slane %v752, 4
          %v776 = vadd.s32 %v752, %v775
          %v777 = vrot.slane %v776, 2
          %v778 = vadd.s32 %v776, %v777
          %v779 = vrot.slane %v778, 1
          %v780 = vadd.s32 %v778, %v779
          %v781 = vrot.slane %v753, 4
          %v782 = vadd.s32 %v753, %v781
          %v783 = vrot.slane %v782, 2
          %v784 = vadd.s32 %v782, %v783
          %v785 = vrot.slane %v784, 1
          %v786 = vadd.s32 %v784, %v785
          %v787 = vrot.slane %v754, 4
          %v788 = vadd.s32 %v754, %v787
          %v789 = vrot.slane %v788, 2
          %v790 = vadd.s32 %v788, %v789
          %v791 = vrot.slane %v790, 1
          %v792 = vadd.s32 %v790, %v791
          %v793 = vrot.slane %v755, 4
          %v794 = vadd.s32 %v755, %v793
          %v795 = vrot.slane %v794, 2
          %v796 = vadd.s32 %v794, %v795
          %v797 = vrot.slane %v796, 1
          %v798 = vadd.s32 %v796, %v797
          %v799 = vrot.slane %v756, 4
          %v800 = vadd.s32 %v756, %v799
          %v801 = vrot.slane %v800, 2
          %v802 = vadd.s32 %v800, %v801
          %v803 = vrot.slane %v802, 1
          %v804 = vadd.s32 %v802, %v803
          %v805 = vsel %vm723, %v768, %v762
          %v806 = vsel %vm725, %v774, %v805
          %v807 = vsel %vm727, %v780, %v806
          %v808 = vsel %vm729, %v786, %v807
          %v809 = vsel %vm731, %v792, %v808
          %v810 = vsel %vm733, %v798, %v809
          %v811 = vsel %vm735, %v804, %v810
          %v812 = vand.u32 %v811, 65535
          %v813 = vshrl.u32 %v811, 16
          %v814 = vcvt.s32.f32 %v812
          %v815 = vcvt.s32.f32 %v813
          %816 = vadd.xlane.f32.xlu0 %v814
          %v817 = vpop.xlane.xlu0 %816
          %818 = vadd.xlane.f32.xlu0 %v815
          %v819 = vpop.xlane.xlu0 %818
          %v820 = vcvt.f32.s32 %v817
          %v821 = vcvt.f32.s32 %v819
          %v822 = vshll.u32 %v821, 16
          %v823 = vadd.s32 %v822, %v820
          %vm824 = vcmp.lt.s32.totalorder %v748, 7
          %v825 = vsel %vm824, %v748, 7
          %vm826 = vcmp.lt.s32.totalorder %v823, 7
          %v827 = vsel %vm826, %v823, 7
          %v828 = vlaneseq
          %v829 = vand.u32 %v828, 127
          %vm830 = vcmp.eq.s32.totalorder %v829, %v825
          %v831 = vadd.s32 %v827, 8
          %vm832 = vcmp.eq.s32.totalorder %v829, %v831
          %vm833 = vmor %vm830, %vm832
          %v834 = vsel %vm833, 1, 0
          %v835 = vcvt.s32.f32 %v834
          %v836 = vld [vmem:[#allocation15] sm:$0xff]
          %v837 = vld [vmem:[#allocation15 + $0x8] sm:$0xff]
          %vm838 = vcmask 130048
          %v840 = vsel %vm838, %v835, 0
          %842 = vmatprep.subr.mxu0 0.0
          %843 = vmatpush1.msra.mxu0 0.0
          %844 = vmatprep.subr.mxu0 0.0
          %845 = vmatpush1.msra.mxu0 0.0
          %846 = vmatprep.subr.mxu0 0.0
          %847 = vmatpush1.msra.mxu0 0.0
          %848 = vmatprep.subr.mxu0 0.0
          %849 = vmatpush1.msra.mxu0 0.0
          %850 = vmatprep.subr.mxu0 0.0
          %851 = vmatpush1.msra.mxu0 0.0
          %852 = vmatprep.subr.mxu0 0.0
          %853 = vmatpush1.msra.mxu0 0.0
          %854 = vmatprep.subr.mxu0 0.0
          %855 = vmatpush1.msra.mxu0 0.0
          %856 = vmatprep.subr.mxu0 0.0
          %857 = vmatpush1.msra.mxu0 0.0
          %858 = vmatprep.subr.mxu0 0.0
          %859 = vmatpush1.msra.mxu0 0.0
          %860 = vmatprep.subr.mxu0 0.0
          %861 = vmatpush1.msra.mxu0 0.0
          %862 = vmatprep.subr.mxu0 0.0
          %863 = vmatpush1.msra.mxu0 0.0
          %864 = vmatprep.subr.mxu0 0.0
          %865 = vmatpush1.msra.mxu0 0.0
          %866 = vmatprep.subr.mxu0 0.0
          %867 = vmatpush1.msra.mxu0 0.0
          %868 = vmatprep.subr.mxu0 0.0
          %869 = vmatpush1.msra.mxu0 0.0
          %870 = vmatprep.subr.mxu0 0.0
          %871 = vmatpush1.msra.mxu0 %v837
          %872 = vmatprep.subr.mxu0 0.0
          %873 = vmatpush1.msra.mxu0 %v836
          %874 = vmatprep.subr.mxu0 0.0
          %875 = vmatpush2.msra.mxu0 0.0
          %876 = vmatprep.subr.mxu0 0.0
          %877 = vmatpush2.msra.mxu0 0.0
          %878 = vmatprep.subr.mxu0 0.0
          %879 = vmatpush2.msra.mxu0 0.0
          %880 = vmatprep.subr.mxu0 0.0
          %881 = vmatpush2.msra.mxu0 0.0
          %882 = vmatprep.subr.mxu0 0.0
          %883 = vmatpush2.msra.mxu0 0.0
          %884 = vmatprep.subr.mxu0 0.0
          %885 = vmatpush2.msra.mxu0 0.0
          %886 = vmatprep.subr.mxu0 0.0
          %887 = vmatpush2.msra.mxu0 0.0
          %888 = vmatprep.subr.mxu0 0.0
          %889 = vmatpush2.msra.mxu0 0.0
          %890 = vmatprep.subr.mxu0 0.0
          %891 = vmatpush2.msra.mxu0 0.0
          %892 = vmatprep.subr.mxu0 0.0
          %893 = vmatpush2.msra.mxu0 0.0
          %894 = vmatprep.subr.mxu0 0.0
          %895 = vmatpush2.msra.mxu0 0.0
          %896 = vmatprep.subr.mxu0 0.0
          %897 = vmatpush2.msra.mxu0 0.0
          %898 = vmatprep.subr.mxu0 0.0
          %899 = vmatpush2.msra.mxu0 0.0
          %900 = vmatprep.subr.mxu0 0.0
          %901 = vmatpush2.msra.mxu0 0.0
          %902 = vmatprep.subr.mxu0 0.0
          %903 = vmatpush2.msra.mxu0 0.0
          %904 = vmatprep.subr.mxu0 0.0
          %905 = vmatpush2.msra.mxu0 0.0
          %906 = vmatprep.mubr.f32.mxu0 0.0
          %907 = vmatmul.mubr.f32.gmra.mxu0 %v840
          %v908 = vpop.f32.mrf.mxu0
          %v909 = vadd.f32 0.0, %v908
          %v910 = vpop.f32.mrf.mxu0
          %911 = vdwg.mxu0
          %v912 = vld [vmem:[%s316] sm:$0xff]
          %v913 = vadd.f32 %v912, %v909
          %vm914 = vcmask 261120
          %915 = vst.msk [vmem:[%s372] sm:$0xff] %vm914, %v913
        $region68: #{tpu_custom_call.1} parent=35 // pred_fallthru
          _
        %s916 = sand.u32 %s188, 1
        %s917 = scalar_lea.sflag [#allocation11], %s916
        %s918 = sand.u32 %s188, 1
        %s919 = smul.addr %s918, 8
        %s920 = scalar_lea.vmem [#allocation17], %s919
        // Predicated region
        $region69: #{tpu_custom_call.1} parent=35 // pred_check
          %p921 = pneg %p198
        $region70: #{tpu_custom_call.1} parent=35 // pred_check_branch
          %923 = sbr.rel (%p921) target = $region72
        $region71: #{tpu_custom_call.1} parent=35 // pred_region
          %s925 = ssub.s32 128, 128
          %926 = vsyncadd %s917, %s925
          %s927 = smul.addr %s49, 128
          %s928 = scalar_lea.hbm %s8, %s927
          %s930 = sshll.u32 %s920, 4
          %s931 = int_to_ptr.vmem [resolvable:$true] %s930
          %933 = dma.vmem_to_hbm [thread:$0]  %s931, 128, %s928, %s917
        $region72: #{tpu_custom_call.1} parent=35 // pred_fallthru
          _
      $region36: #{tpu_custom_call.1} parent=5 // pred_fallthru
        _
      %p934 = scmp.le.s32.totalorder 2, %s40
      // Predicated region
      $region73: #{tpu_custom_call.1} parent=5 // pred_check
        %p935 = pneg %p934
      $region74: #{tpu_custom_call.1} parent=5 // pred_check_branch
        %937 = sbr.rel (%p935) target = $region76
      $region75: #{tpu_custom_call.1} parent=5 // pred_region
        %s938 = ssub.s32 %s40, 2
        // Predicated region
        $region77: #{tpu_custom_call.1} parent=75 // pred_check
          %p939 = pneg %p204
        $region78: #{tpu_custom_call.1} parent=75 // pred_check_branch
          %941 = sbr.rel (%p939) target = $region80
        $region79: #{tpu_custom_call.1} parent=75 // pred_region
          %s942 = sand.u32 %s189, 1
          %s943 = scalar_lea.sflag [#allocation11], %s942
          %s944 = sand.u32 %s189, 1
          %s945 = smul.addr %s944, 8
          %s946 = scalar_lea.vmem [#allocation17], %s945
          %947 = dma.done %s943, 128
        $region80: #{tpu_custom_call.1} parent=75 // pred_fallthru
          _
      $region76: #{tpu_custom_call.1} parent=5 // pred_fallthru
        _
    $region6: #{tpu_custom_call.1} parent=1 // loop_footer
      %s44 = sadd.s32 1, %s40
    $region7: #{tpu_custom_call.1} parent=1 // loop_footer_branch
      %39 = sbr.rel target = $region3
    $region8: #{tpu_custom_call.1} parent=1 // loop_exit
      _
    %948 = vsyncpa [#allocation10], 1
    %s949 = scalar_lea.sflag [#allocation10], 1
    %950 = vsyncpa %s949, 1
    %951 = vsyncpa [#allocation13], 1
    %s952 = scalar_lea.sflag [#allocation13], 1
    %953 = vsyncpa %s952, 1
    %954 = vsyncpa [#allocation16], 1
    %955 = vsyncpa [#allocation11], 1
    %s956 = scalar_lea.sflag [#allocation11], 1
    %957 = vsyncpa %s956, 1

</llo_original>
